<compile_context>
chip_gen: v7x
topology: tpu7x:2x2x1
jax: 0.10.0
libtpu: 0.0.40
codegen_flags: <defaults>
</compile_context>

<pallas_src>
import functools

import jax
import jax.numpy as jnp
from jax.experimental import pallas as pl
from jax.experimental.pallas import tpu as pltpu


def _kd_rnd_ce_kernel(y_ref, t_ref, msk_ref, yr_ref, out_ref, *,
                      inv_T, B, TB, needs_mask):
    i = pl.program_id(0)

    y = y_ref[...].astype(jnp.float32)
    t = t_ref[...].astype(jnp.float32)
    m = msk_ref[...].astype(jnp.float32)
    yr = yr_ref[...].astype(jnp.float32)

    if needs_mask:
        # Zero out rows past the real batch size: zero logits give a uniform
        # softmax on both sides, so KL(uniform || uniform) contributes exactly 0.
        row = i * TB + jax.lax.broadcasted_iota(jnp.int32, (TB, 1), 0)
        valid = row < B
        y = jnp.where(valid, y, 0.0)
        t = jnp.where(valid, t, 0.0)
        m = jnp.where(valid, m, 0.0)
        yr = jnp.where(valid, yr, 0.0)

    def kl_rowsum(q_logits, p_logits):
        # Per-row sum_j p_j * (log p_j - log q_j)  -> shape (TB, 1).
        # Student side: only needs the log-sum-exp.
        q_shift = q_logits - jnp.max(q_logits, axis=-1, keepdims=True)
        lq = q_shift - jnp.log(jnp.sum(jnp.exp(q_shift), axis=-1, keepdims=True))
        # Target side: reuse e_p for both log-sum-exp and the probabilities
        # (saves one exp per element vs. recomputing exp(log_softmax)).
        p_shift = p_logits - jnp.max(p_logits, axis=-1, keepdims=True)
        e_p = jnp.exp(p_shift)
        sum_e = jnp.sum(e_p, axis=-1, keepdims=True)
        lp = p_shift - jnp.log(sum_e)
        p = e_p * (1.0 / sum_e)
        return jnp.sum(p * (lp - lq), axis=-1, keepdims=True)

    row_terms = (kl_rowsum(y * m * inv_T, t * m * inv_T)
                 + kl_rowsum(y * (1.0 - m) * inv_T, yr * (1.0 - m) * inv_T))
    partial = jnp.sum(row_terms, axis=0, keepdims=True)      # (1, 1)

    @pl.when(i == 0)
    def _():
        out_ref[...] = jnp.zeros_like(out_ref)

    out_ref[...] += partial


def _pick_batch_tile(B, C, budget_bytes=8 << 20):
    """Largest batch tile (multiple of 8) such that 4 double-buffered f32
    tiles stay within a conservative VMEM budget (portable to v7x's smaller
    VMEM without raising vmem_limit_bytes)."""
    if B <= 8:
        return B
    per_row = 4 * 2 * C * 4            # 4 inputs x 2 pipeline buffers x f32
    tb = max(8, (budget_bytes // per_row) // 8 * 8)
    tb = min(tb, 1024)                 # >=512-row tiles already ~HBM roofline
    if tb >= B:
        return B                       # single full-batch block is legal
    return tb


def distillation_loss_rnd_ce(y, teacher_scores, msk, lmd, yrand, T=2.0,
                             batch_tile=None):
    """Pallas port of Distillation_Loss_RND_CE.forward. Returns a scalar."""
    B, C = y.shape
    TB = batch_tile if batch_tile is not None else _pick_batch_tile(B, C)
    TB = min(TB, B)
    if TB < B:
        assert TB % 8 == 0, "batch tile must be a multiple of 8 (f32 sublane)"
    num_blocks = pl.cdiv(B, TB)
    needs_mask = (B % TB) != 0

    # TODO(synk): if C << 128 in real workloads, only C/128 of each vreg's
    # lanes are used; a lane-dense relayout would need a different softmax
    # scheme, so it is left as wrapper-side future work.
    tile_spec = pl.BlockSpec((TB, C), lambda i: (i, 0))

    partial = pl.pallas_call(
        functools.partial(_kd_rnd_ce_kernel,
                          inv_T=1.0 / float(T), B=B, TB=TB,
                          needs_mask=needs_mask),
        out_shape=jax.ShapeDtypeStruct((1, 1), jnp.float32),
        grid=(num_blocks,),
        in_specs=[tile_spec, tile_spec, tile_spec, tile_spec],
        out_specs=pl.BlockSpec((1, 1), lambda i: (0, 0)),
        compiler_params=pltpu.CompilerParams(
            dimension_semantics=("arbitrary",)),
    )(y, teacher_scores, msk, yrand)

    # Scalar epilogue: batchmean normalisation and lmd * T^2 scaling.
    scale = jnp.asarray(lmd, jnp.float32) * (float(T) * float(T)) / B
    return partial[0, 0] * scale


def _reference(y, teacher_scores, msk, lmd, yrand, T=2.0):
    """Pure-JAX reference replicating the PyTorch semantics."""
    def kl_batchmean(logits_q, logits_p):
        lq = jax.nn.log_softmax(logits_q, axis=1)
        lp = jax.nn.log_softmax(logits_p, axis=1)
        p = jnp.exp(lp)
        return jnp.sum(p * (lp - lq)) / logits_q.shape[0]

    a = (kl_batchmean(y * msk / T, teacher_scores * msk / T) * lmd * T * T
         + kl_batchmean(y * (1 - msk) / T, yrand * (1 - msk) / T) * lmd * T * T)
    return a


if __name__ == "__main__":
    key = jax.random.PRNGKey(0)
    T = 2.0
    lmd = 0.7

    # Case 1: small [batch, classes], single block.
    k1, k2, k3, k4, k5, k6, k7, k8 = jax.random.split(key, 8)
    B, C = 8, 32
    y = jax.random.normal(k1, (B, C), dtype=jnp.float32)
    teacher = jax.random.normal(k2, (B, C), dtype=jnp.float32)
    yrand = jax.random.normal(k3, (B, C), dtype=jnp.float32)
    msk = (jax.random.uniform(k4, (B, C)) > 0.5).astype(jnp.float32)

    loss = distillation_loss_rnd_ce(y, teacher, msk, lmd, yrand, T=T)
    loss = jax.block_until_ready(loss)
    ref = _reference(y, teacher, msk, lmd, yrand, T=T)
    assert jnp.allclose(loss, ref, rtol=1e-3, atol=1e-5), (loss, ref)

    # Case 2: batch not a multiple of the tile -> exercises the grid
    # accumulator and the padded-row masking path.
    B2, C2 = 20, 32
    y2 = jax.random.normal(k5, (B2, C2), dtype=jnp.float32)
    teacher2 = jax.random.normal(k6, (B2, C2), dtype=jnp.float32)
    yrand2 = jax.random.normal(k7, (B2, C2), dtype=jnp.float32)
    msk2 = (jax.random.uniform(k8, (B2, C2)) > 0.5).astype(jnp.float32)

    loss2 = distillation_loss_rnd_ce(y2, teacher2, msk2, lmd, yrand2, T=T,
                                     batch_tile=8)
    loss2 = jax.block_until_ready(loss2)
    ref2 = _reference(y2, teacher2, msk2, lmd, yrand2, T=T)
    assert jnp.allclose(loss2, ref2, rtol=1e-3, atol=1e-5), (loss2, ref2)

    print("KERNEL_OK")
</pallas_src>

<mosaic_0001>
module attributes {stable_mosaic.version = 11 : i64} {
  func.func @_kd_rnd_ce_kernel(%arg0: i32, %arg1: memref<8x32xf32, #tpu.memory_space<vmem>>, %arg2: memref<8x32xf32, #tpu.memory_space<vmem>>, %arg3: memref<8x32xf32, #tpu.memory_space<vmem>>, %arg4: memref<8x32xf32, #tpu.memory_space<vmem>>, %arg5: memref<1x1xf32, #tpu.memory_space<vmem>>) attributes {dimension_semantics = [#tpu.dimension_semantics<arbitrary>], iteration_bounds = array<i64: 1>, scalar_prefetch = 0 : i64, scratch_operands = 0 : i64, tpu.core_type = #tpu.core_type<tc>, window_params = [{transform_indices = @transform_0, window_bounds = array<i64: 8, 32>}, {transform_indices = @transform_1, window_bounds = array<i64: 8, 32>}, {transform_indices = @transform_2, window_bounds = array<i64: 8, 32>}, {transform_indices = @transform_3, window_bounds = array<i64: 8, 32>}, {pipeline_mode = #tpu.pipeline_mode<synchronous>, transform_indices = @transform_4, window_bounds = array<i64: 1, 1>}]} {
    %c0 = arith.constant 0 : index
    %c0_0 = arith.constant 0 : index
    %0 = vector.load %arg1[%c0, %c0_0] : memref<8x32xf32, #tpu.memory_space<vmem>>, vector<8x32xf32>
    %c0_1 = arith.constant 0 : index
    %c0_2 = arith.constant 0 : index
    %1 = vector.load %arg2[%c0_1, %c0_2] : memref<8x32xf32, #tpu.memory_space<vmem>>, vector<8x32xf32>
    %c0_3 = arith.constant 0 : index
    %c0_4 = arith.constant 0 : index
    %2 = vector.load %arg3[%c0_3, %c0_4] : memref<8x32xf32, #tpu.memory_space<vmem>>, vector<8x32xf32>
    %c0_5 = arith.constant 0 : index
    %c0_6 = arith.constant 0 : index
    %3 = vector.load %arg4[%c0_5, %c0_6] : memref<8x32xf32, #tpu.memory_space<vmem>>, vector<8x32xf32>
    %4 = arith.mulf %0, %2 : vector<8x32xf32>
    %cst = arith.constant 5.000000e-01 : f32
    %5 = vector.broadcast %cst : f32 to vector<8x32xf32>
    %6 = arith.mulf %4, %5 : vector<8x32xf32>
    %7 = arith.mulf %1, %2 : vector<8x32xf32>
    %cst_7 = arith.constant 5.000000e-01 : f32
    %8 = vector.broadcast %cst_7 : f32 to vector<8x32xf32>
    %9 = arith.mulf %7, %8 : vector<8x32xf32>
    %cst_8 = arith.constant dense<0xFF800000> : vector<8xf32>
    %10 = vector.multi_reduction <maximumf>, %6, %cst_8 [1] : vector<8x32xf32> to vector<8xf32>
    %11 = vector.shape_cast %10 : vector<8xf32> to vector<8x1xf32>
    %12 = vector.broadcast %11 : vector<8x1xf32> to vector<8x32xf32>
    %13 = arith.subf %6, %12 : vector<8x32xf32>
    %14 = math.exp %13 : vector<8x32xf32>
    %cst_9 = arith.constant dense<0.000000e+00> : vector<8xf32>
    %15 = vector.multi_reduction <add>, %14, %cst_9 [1] : vector<8x32xf32> to vector<8xf32>
    %16 = vector.shape_cast %15 : vector<8xf32> to vector<8x1xf32>
    %17 = math.log %16 : vector<8x1xf32>
    %18 = vector.broadcast %17 : vector<8x1xf32> to vector<8x32xf32>
    %19 = arith.subf %13, %18 : vector<8x32xf32>
    %cst_10 = arith.constant dense<0xFF800000> : vector<8xf32>
    %20 = vector.multi_reduction <maximumf>, %9, %cst_10 [1] : vector<8x32xf32> to vector<8xf32>
    %21 = vector.shape_cast %20 : vector<8xf32> to vector<8x1xf32>
    %22 = vector.broadcast %21 : vector<8x1xf32> to vector<8x32xf32>
    %23 = arith.subf %9, %22 : vector<8x32xf32>
    %24 = math.exp %23 : vector<8x32xf32>
    %cst_11 = arith.constant dense<0.000000e+00> : vector<8xf32>
    %25 = vector.multi_reduction <add>, %24, %cst_11 [1] : vector<8x32xf32> to vector<8xf32>
    %26 = vector.shape_cast %25 : vector<8xf32> to vector<8x1xf32>
    %27 = math.log %26 : vector<8x1xf32>
    %28 = vector.broadcast %27 : vector<8x1xf32> to vector<8x32xf32>
    %29 = arith.subf %23, %28 : vector<8x32xf32>
    %cst_12 = arith.constant 1.000000e+00 : f32
    %30 = vector.broadcast %cst_12 : f32 to vector<8x1xf32>
    %31 = arith.divf %30, %26 : vector<8x1xf32>
    %32 = vector.broadcast %31 : vector<8x1xf32> to vector<8x32xf32>
    %33 = arith.mulf %24, %32 : vector<8x32xf32>
    %34 = arith.subf %29, %19 : vector<8x32xf32>
    %35 = arith.mulf %33, %34 : vector<8x32xf32>
    %cst_13 = arith.constant dense<0.000000e+00> : vector<8xf32>
    %36 = vector.multi_reduction <add>, %35, %cst_13 [1] : vector<8x32xf32> to vector<8xf32>
    %37 = vector.shape_cast %36 : vector<8xf32> to vector<8x1xf32>
    %cst_14 = arith.constant 1.000000e+00 : f32
    %38 = vector.broadcast %cst_14 : f32 to vector<8x32xf32>
    %39 = arith.subf %38, %2 : vector<8x32xf32>
    %40 = arith.mulf %0, %39 : vector<8x32xf32>
    %cst_15 = arith.constant 5.000000e-01 : f32
    %41 = vector.broadcast %cst_15 : f32 to vector<8x32xf32>
    %42 = arith.mulf %40, %41 : vector<8x32xf32>
    %cst_16 = arith.constant 1.000000e+00 : f32
    %43 = vector.broadcast %cst_16 : f32 to vector<8x32xf32>
    %44 = arith.subf %43, %2 : vector<8x32xf32>
    %45 = arith.mulf %3, %44 : vector<8x32xf32>
    %cst_17 = arith.constant 5.000000e-01 : f32
    %46 = vector.broadcast %cst_17 : f32 to vector<8x32xf32>
    %47 = arith.mulf %45, %46 : vector<8x32xf32>
    %cst_18 = arith.constant dense<0xFF800000> : vector<8xf32>
    %48 = vector.multi_reduction <maximumf>, %42, %cst_18 [1] : vector<8x32xf32> to vector<8xf32>
    %49 = vector.shape_cast %48 : vector<8xf32> to vector<8x1xf32>
    %50 = vector.broadcast %49 : vector<8x1xf32> to vector<8x32xf32>
    %51 = arith.subf %42, %50 : vector<8x32xf32>
    %52 = math.exp %51 : vector<8x32xf32>
    %cst_19 = arith.constant dense<0.000000e+00> : vector<8xf32>
    %53 = vector.multi_reduction <add>, %52, %cst_19 [1] : vector<8x32xf32> to vector<8xf32>
    %54 = vector.shape_cast %53 : vector<8xf32> to vector<8x1xf32>
    %55 = math.log %54 : vector<8x1xf32>
    %56 = vector.broadcast %55 : vector<8x1xf32> to vector<8x32xf32>
    %57 = arith.subf %51, %56 : vector<8x32xf32>
    %cst_20 = arith.constant dense<0xFF800000> : vector<8xf32>
    %58 = vector.multi_reduction <maximumf>, %47, %cst_20 [1] : vector<8x32xf32> to vector<8xf32>
    %59 = vector.shape_cast %58 : vector<8xf32> to vector<8x1xf32>
    %60 = vector.broadcast %59 : vector<8x1xf32> to vector<8x32xf32>
    %61 = arith.subf %47, %60 : vector<8x32xf32>
    %62 = math.exp %61 : vector<8x32xf32>
    %cst_21 = arith.constant dense<0.000000e+00> : vector<8xf32>
    %63 = vector.multi_reduction <add>, %62, %cst_21 [1] : vector<8x32xf32> to vector<8xf32>
    %64 = vector.shape_cast %63 : vector<8xf32> to vector<8x1xf32>
    %65 = math.log %64 : vector<8x1xf32>
    %66 = vector.broadcast %65 : vector<8x1xf32> to vector<8x32xf32>
    %67 = arith.subf %61, %66 : vector<8x32xf32>
    %cst_22 = arith.constant 1.000000e+00 : f32
    %68 = vector.broadcast %cst_22 : f32 to vector<8x1xf32>
    %69 = arith.divf %68, %64 : vector<8x1xf32>
    %70 = vector.broadcast %69 : vector<8x1xf32> to vector<8x32xf32>
    %71 = arith.mulf %62, %70 : vector<8x32xf32>
    %72 = arith.subf %67, %57 : vector<8x32xf32>
    %73 = arith.mulf %71, %72 : vector<8x32xf32>
    %cst_23 = arith.constant dense<0.000000e+00> : vector<8xf32>
    %74 = vector.multi_reduction <add>, %73, %cst_23 [1] : vector<8x32xf32> to vector<8xf32>
    %75 = vector.shape_cast %74 : vector<8xf32> to vector<8x1xf32>
    %76 = arith.addf %37, %75 : vector<8x1xf32>
    %cst_24 = arith.constant dense<0.000000e+00> : vector<1xf32>
    %77 = vector.multi_reduction <add>, %76, %cst_24 [0] : vector<8x1xf32> to vector<1xf32>
    %78 = vector.shape_cast %77 : vector<1xf32> to vector<1x1xf32>
    %c0_i32 = arith.constant 0 : i32
    %79 = arith.cmpi eq, %arg0, %c0_i32 : i32
    %80 = arith.extui %79 : i1 to i32
    %c0_i32_25 = arith.constant 0 : i32
    %81 = arith.cmpi ne, %80, %c0_i32_25 : i32
    scf.if %81 {
      %cst_30 = arith.constant 0.000000e+00 : f32
      %85 = vector.broadcast %cst_30 : f32 to vector<1x1xf32>
      %c0_31 = arith.constant 0 : index
      %c0_32 = arith.constant 0 : index
      %86 = vector.load %arg5[%c0_31, %c0_32] : memref<1x1xf32, #tpu.memory_space<vmem>>, vector<1x1xf32>
      tpu.vector_store %arg5[%c0_31, %c0_32], %85 {strides = array<i32>} : memref<1x1xf32, #tpu.memory_space<vmem>>, vector<1x1xf32>,
    } else {
    }
    %c0_26 = arith.constant 0 : index
    %c0_27 = arith.constant 0 : index
    %82 = vector.load %arg5[%c0_26, %c0_27] : memref<1x1xf32, #tpu.memory_space<vmem>>, vector<1x1xf32>
    %83 = arith.addf %82, %78 : vector<1x1xf32>
    %c0_28 = arith.constant 0 : index
    %c0_29 = arith.constant 0 : index
    %84 = vector.load %arg5[%c0_28, %c0_29] : memref<1x1xf32, #tpu.memory_space<vmem>>, vector<1x1xf32>
    tpu.vector_store %arg5[%c0_28, %c0_29], %83 {strides = array<i32>} : memref<1x1xf32, #tpu.memory_space<vmem>>, vector<1x1xf32>,
    return
  }
  func.func @transform_0(%arg0: i32) -> (i32, i32) {
    %c0_i32 = arith.constant 0 : i32
    %c0_i32_0 = arith.constant 0 : i32
    return %arg0, %c0_i32 : i32, i32
  }
  func.func @transform_1(%arg0: i32) -> (i32, i32) {
    %c0_i32 = arith.constant 0 : i32
    %c0_i32_0 = arith.constant 0 : i32
    return %arg0, %c0_i32 : i32, i32
  }
  func.func @transform_2(%arg0: i32) -> (i32, i32) {
    %c0_i32 = arith.constant 0 : i32
    %c0_i32_0 = arith.constant 0 : i32
    return %arg0, %c0_i32 : i32, i32
  }
  func.func @transform_3(%arg0: i32) -> (i32, i32) {
    %c0_i32 = arith.constant 0 : i32
    %c0_i32_0 = arith.constant 0 : i32
    return %arg0, %c0_i32 : i32, i32
  }
  func.func @transform_4(%arg0: i32) -> (i32, i32) {
    %c0_i32 = arith.constant 0 : i32
    %c0_i32_0 = arith.constant 0 : i32
    %c0_i32_1 = arith.constant 0 : i32
    return %c0_i32, %c0_i32_0 : i32, i32
  }
}

</mosaic_0001>

<llo_original>
// kernel: tpu_custom_call.1
$region0: #{tpu_custom_call.1}
  #allocation0 [shape = 'u32[]', space=smem, size = 0x4, offset = 0x4, fixed_abs, tag = 'smem constant byte address 0x4 - core index']
  #allocation1 [shape = 'u32[144,128]{1,0:T(1,128)}', space=vmem, size = 0x12000, scoped, tag = 'internal scratch']
  %s0 = inlined_call_operand.hbm [shape: f32[8,32], index: 0, kind: input, shape index: {}]
  %s1 = inlined_call_operand.hbm [shape: f32[8,32], index: 1, kind: input, shape index: {}]
  %s2 = inlined_call_operand.hbm [shape: f32[8,32], index: 2, kind: input, shape index: {}]
  %s3 = inlined_call_operand.vmem [shape: f32[8,32], index: 3, kind: input, shape index: {}]
  %s4 = inlined_call_operand.hbm [shape: f32[1,1], index: 4, kind: output, shape index: {}]
  %s5 = sld [smem:[#allocation0]]
  $region42: #{tpu_custom_call.1} parent=0
    _
  %s7 = ssub.s32 1, %s5
  %s8 = scalar_select 0, %s7, %s5
  $region1: #{tpu_custom_call.1} parent=0
    #allocation2 [shape = 'u8[4096]{0}', space=vmem, size = 0x1000, scoped, tag = 'input window, operand 0, single buffered']
    #allocation3 [shape = 's32[1]{0}', space=sflag, size = 0x4, scoped, tag = 'scoped memory for tpu_custom_call.1']
    #allocation4 [shape = 's32[1]{0}', space=sflag, size = 0x4, scoped, tag = 'scoped memory for tpu_custom_call.1']
    #allocation5 [shape = 'u8[4096]{0}', space=vmem, size = 0x1000, scoped, tag = 'input window, operand 1, single buffered']
    #allocation6 [shape = 's32[1]{0}', space=sflag, size = 0x4, scoped, tag = 'scoped memory for tpu_custom_call.1']
    #allocation7 [shape = 'u8[4096]{0}', space=vmem, size = 0x1000, scoped, tag = 'input window, operand 2, single buffered']
    #allocation8 [shape = 'u8[512]{0}', space=vmem, size = 0x400, scoped, tag = 'output window, operand 0, single buffered']
    %9 = vsyncpa [#allocation3], 0
    %10 = vsyncpa [#allocation6], 0
    %11 = vsyncpa [#allocation4], 0
    // Predicated region
    $region2: #{tpu_custom_call.1} parent=1 // pred_check
      _
    $region3: #{tpu_custom_call.1} parent=1 // pred_check_branch
      %13 = sbr.rel (0) target = $region5
    $region4: #{tpu_custom_call.1} parent=1 // pred_region
      %s15 = ssub.s32 128, 128
      %16 = vsyncadd [#allocation3], %s15
      %s18 = sshll.u32 [#allocation2], 4
      %s19 = int_to_ptr.vmem [resolvable:$true] %s18
      %21 = dma.hbm_to_vmem [thread:$0]  %s0, 128, %s19, [#allocation3]
    $region5: #{tpu_custom_call.1} parent=1 // pred_fallthru
      _
    // Predicated region
    $region6: #{tpu_custom_call.1} parent=1 // pred_check
      _
    $region7: #{tpu_custom_call.1} parent=1 // pred_check_branch
      %23 = sbr.rel (0) target = $region9
    $region8: #{tpu_custom_call.1} parent=1 // pred_region
      %s25 = ssub.s32 128, 128
      %26 = vsyncadd [#allocation6], %s25
      %s28 = sshll.u32 [#allocation5], 4
      %s29 = int_to_ptr.vmem [resolvable:$true] %s28
      %31 = dma.hbm_to_vmem [thread:$0]  %s1, 128, %s29, [#allocation6]
    $region9: #{tpu_custom_call.1} parent=1 // pred_fallthru
      _
    // Predicated region
    $region10: #{tpu_custom_call.1} parent=1 // pred_check
      _
    $region11: #{tpu_custom_call.1} parent=1 // pred_check_branch
      %33 = sbr.rel (0) target = $region13
    $region12: #{tpu_custom_call.1} parent=1 // pred_region
      %s35 = ssub.s32 128, 128
      %36 = vsyncadd [#allocation6], %s35
      %s38 = sshll.u32 [#allocation7], 4
      %s39 = int_to_ptr.vmem [resolvable:$true] %s38
      %41 = dma.hbm_to_vmem [thread:$0]  %s2, 128, %s39, [#allocation6]
    $region13: #{tpu_custom_call.1} parent=1 // pred_fallthru
      _
    // Predicated region
    $region14: #{tpu_custom_call.1} parent=1 // pred_check
      _
    $region15: #{tpu_custom_call.1} parent=1 // pred_check_branch
      %43 = sbr.rel (0) target = $region17
    $region16: #{tpu_custom_call.1} parent=1 // pred_region
      _
    $region17: #{tpu_custom_call.1} parent=1 // pred_fallthru
      _
    // Predicated region
    $region18: #{tpu_custom_call.1} parent=1 // pred_check
      _
    $region19: #{tpu_custom_call.1} parent=1 // pred_check_branch
      %45 = sbr.rel (0) target = $region21
    $region20: #{tpu_custom_call.1} parent=1 // pred_region
      %46 = dma.done [#allocation3], 128
    $region21: #{tpu_custom_call.1} parent=1 // pred_fallthru
      _
    // Predicated region
    $region22: #{tpu_custom_call.1} parent=1 // pred_check
      _
    $region23: #{tpu_custom_call.1} parent=1 // pred_check_branch
      %48 = sbr.rel (0) target = $region25
    $region24: #{tpu_custom_call.1} parent=1 // pred_region
      %49 = dma.done [#allocation6], 128
    $region25: #{tpu_custom_call.1} parent=1 // pred_fallthru
      _
    // Predicated region
    $region26: #{tpu_custom_call.1} parent=1 // pred_check
      _
    $region27: #{tpu_custom_call.1} parent=1 // pred_check_branch
      %51 = sbr.rel (0) target = $region29
    $region28: #{tpu_custom_call.1} parent=1 // pred_region
      %52 = dma.done [#allocation6], 128
    $region29: #{tpu_custom_call.1} parent=1 // pred_fallthru
      _
    %v53 = vld [vmem:[#allocation2] sm:$0xff]
    %v54 = vld [vmem:[#allocation5] sm:$0xff]
    %v55 = vld [vmem:[#allocation7] sm:$0xff]
    %v56 = vld [vmem:[%s3] sm:$0xff]
    %v57 = vmul.f32 %v53, %v55
    %v58 = vmul.f32 %v57, 0.5
    %v59 = vmul.f32 %v54, %v55
    %v60 = vmul.f32 %v59, 0.5
    %vm61 = vcmask 261120
    %v62 = vsel %vm61, %v58, -inf
    %63 = vmax.xlane.f32.xlu0 %v62
    %v64 = vpop.xlane.xlu0 %63
    %v65 = vsub.f32 %v58, %v64
    %v66 = vmul.f32 %v65, 1.442695
    %v67 = vpow.pop %v66
    %v68 = vsel %vm61, %v67, 0.0
    %69 = vadd.xlane.f32.xlu0 %v68
    %v70 = vpop.xlane.xlu0 %69
    %v71 = vlog2.pop %v70
    %v72 = vmul.f32 %v71, 0.6931472
    %v73 = vsub.f32 %v65, %v72
    %v74 = vsel %vm61, %v60, -inf
    %75 = vmax.xlane.f32.xlu0 %v74
    %v76 = vpop.xlane.xlu0 %75
    %v77 = vsub.f32 %v60, %v76
    %v78 = vmul.f32 %v77, 1.442695
    %v79 = vpow.pop %v78
    %v80 = vsel %vm61, %v79, 0.0
    %81 = vadd.xlane.f32.xlu0 %v80
    %v82 = vpop.xlane.xlu0 %81
    %v83 = vlog2.pop %v82
    %v84 = vmul.f32 %v83, 0.6931472
    %v85 = vsub.f32 %v77, %v84
    %v86 = vrcp.pop %v82
    %v87 = vmul.f32 1.0, %v86
    %v88 = vmul.f32 %v79, %v87
    %v89 = vsub.f32 %v85, %v73
    %v90 = vmul.f32 %v88, %v89
    %v91 = vsel %vm61, %v90, 0.0
    %92 = vadd.xlane.f32.xlu0 %v91
    %v93 = vpop.xlane.xlu0 %92
    %v94 = vsub.f32 1.0, %v55
    %v95 = vmul.f32 %v53, %v94
    %v96 = vmul.f32 %v95, 0.5
    %v97 = vmul.f32 %v56, %v94
    %v98 = vmul.f32 %v97, 0.5
    %v99 = vsel %vm61, %v96, -inf
    %100 = vmax.xlane.f32.xlu0 %v99
    %v101 = vpop.xlane.xlu0 %100
    %v102 = vsub.f32 %v96, %v101
    %v103 = vmul.f32 %v102, 1.442695
    %v104 = vpow.pop %v103
    %v105 = vsel %vm61, %v104, 0.0
    %106 = vadd.xlane.f32.xlu0 %v105
    %v107 = vpop.xlane.xlu0 %106
    %v108 = vlog2.pop %v107
    %v109 = vmul.f32 %v108, 0.6931472
    %v110 = vsub.f32 %v102, %v109
    %v111 = vsel %vm61, %v98, -inf
    %112 = vmax.xlane.f32.xlu0 %v111
    %v113 = vpop.xlane.xlu0 %112
    %v114 = vsub.f32 %v98, %v113
    %v115 = vmul.f32 %v114, 1.442695
    %v116 = vpow.pop %v115
    %v117 = vsel %vm61, %v116, 0.0
    %118 = vadd.xlane.f32.xlu0 %v117
    %v119 = vpop.xlane.xlu0 %118
    %v120 = vlog2.pop %v119
    %v121 = vmul.f32 %v120, 0.6931472
    %v122 = vsub.f32 %v114, %v121
    %v123 = vrcp.pop %v119
    %v124 = vmul.f32 1.0, %v123
    %v125 = vmul.f32 %v116, %v124
    %v126 = vsub.f32 %v122, %v110
    %v127 = vmul.f32 %v125, %v126
    %v128 = vsel %vm61, %v127, 0.0
    %129 = vadd.xlane.f32.xlu0 %v128
    %v130 = vpop.xlane.xlu0 %129
    %v131 = vadd.f32 %v93, %v130
    %v132 = vrot.slane %v131, 4
    %v133 = vadd.f32 %v131, %v132
    %v134 = vrot.slane %v133, 2
    %v135 = vadd.f32 %v133, %v134
    %v136 = vrot.slane %v135, 1
    %v137 = vadd.f32 %v135, %v136
    %p138 = scmp.eq.s32.totalorder 0, 0
    // Predicated region
    $region30: #{tpu_custom_call.1} parent=1 // pred_check
      %p139 = pneg %p138
    $region31: #{tpu_custom_call.1} parent=1 // pred_check_branch
      %141 = sbr.rel (%p139) target = $region33
    $region32: #{tpu_custom_call.1} parent=1 // pred_region
      %vm142 = vcmask 0
      %143 = vst.msk [vmem:[#allocation8] sm:$0x1] %vm142, 0.0
    $region33: #{tpu_custom_call.1} parent=1 // pred_fallthru
      _
    %v144 = vld [vmem:[#allocation8] sm:$0x1]
    %v145 = vadd.f32 %v144, %v137
    %vm146 = vcmask 0
    %147 = vst.msk [vmem:[#allocation8] sm:$0x1] %vm146, %v145
    // Predicated region
    $region34: #{tpu_custom_call.1} parent=1 // pred_check
      _
    $region35: #{tpu_custom_call.1} parent=1 // pred_check_branch
      %149 = sbr.rel (0) target = $region37
    $region36: #{tpu_custom_call.1} parent=1 // pred_region
      %s151 = ssub.s32 16, 16
      %152 = vsyncadd [#allocation4], %s151
      %s154 = sshll.u32 [#allocation8], 4
      %s155 = int_to_ptr.vmem [resolvable:$true] %s154
      %157 = dma.vmem_to_hbm [thread:$0]  %s155, 16, %s4, [#allocation4]
    $region37: #{tpu_custom_call.1} parent=1 // pred_fallthru
      _
    // Predicated region
    $region38: #{tpu_custom_call.1} parent=1 // pred_check
      _
    $region39: #{tpu_custom_call.1} parent=1 // pred_check_branch
      %159 = sbr.rel (0) target = $region41
    $region40: #{tpu_custom_call.1} parent=1 // pred_region
      %160 = dma.done [#allocation4], 16
    $region41: #{tpu_custom_call.1} parent=1 // pred_fallthru
      _
    %161 = vsyncpa [#allocation3], 1
    %162 = vsyncpa [#allocation6], 1
    %163 = vsyncpa [#allocation4], 1

</llo_original>
